<compile_context>
chip_gen: v5e
topology: v5e:2x2
jax: 0.10.0
libtpu: 0.0.40
codegen_flags: <defaults>
</compile_context>

<pallas_src>
import functools
import numpy as np
import jax
import jax.numpy as jnp
from jax.experimental import pallas as pl
from jax.experimental.pallas import tpu as pltpu


def _ac_loss_kernel(fake_ref, real_ref, out_ref, *, n_coefs):
    B, L = fake_ref.shape
    T = L - n_coefs
    inv_T = 1.0 / float(T)

    # Pack fake (rows 0..B-1) and real (rows B..2B-1) into one tile so the base
    # statistics are computed once over 2B rows instead of twice over B rows.
    x = jnp.concatenate(
        [fake_ref[...].astype(jnp.float32), real_ref[...].astype(jnp.float32)],
        axis=0)                                            # (2B, L)

    x0 = x[:, :T]                                          # base window
    mu0 = jnp.sum(x0, axis=1, keepdims=True) * inv_T
    d0 = x0 - mu0                                          # zero-mean base (2B, T)

    # Un-normalised lag-0 covariance (the /T cancels in the coefficient ratio).
    # Since sum(d0) == 0, sum(d0 * x0) == sum(d0 * d0).
    c0 = jnp.sum(d0 * x0, axis=1, keepdims=True)           # (2B, 1)
    ds = d0 * (1.0 / c0)                                   # coef[lag] = sum(ds * x_lag)

    ds_f, ds_r = ds[:B, :], ds[B:, :]
    x_f, x_r = x[:B, :], x[B:, :]

    # For each lag >= 1:
    #   fake_coef - real_coef = sum_t( ds_f * x_f[:, lag:lag+T]
    #                                - ds_r * x_r[:, lag:lag+T] )
    # Build all lag difference rows, stack them along sublanes and reduce once.
    rows = []
    for lag in range(1, n_coefs + 1):                      # lag 0 gives |1-1| = 0
        rows.append(ds_f * x_f[:, lag:lag + T] - ds_r * x_r[:, lag:lag + T])
    slab = jnp.concatenate(rows, axis=0)                   # (n_coefs*B, T)
    v = jnp.sum(slab, axis=1, keepdims=True)               # (n_coefs*B, 1)

    total = jnp.sum(jnp.abs(v), axis=0, keepdims=True)     # (1, 1)
    out_ref[...] = total / float(B * (n_coefs + 1))        # L1Loss 'mean'


def autocorrelation_loss(fake, real, n_coefs):
    """fake, real: (B, 1, L) arrays (matching the PyTorch module's inputs)."""
    b_size = fake.shape[0]
    signal_length = fake.shape[2]
    com_len = signal_length - n_coefs
    if com_len < n_coefs:
        raise ValueError(
            "Comparison length {} must be >= number of lags {}".format(com_len, n_coefs)
        )
    if n_coefs == 0:
        # Only lag-0 coefficients, which are identically 1 for both series.
        return jnp.float32(0.0)

    # No wrapper-side cast: the kernel casts once internally (halves HBM bytes
    # if upstream produces bf16).
    f2 = jnp.reshape(fake, (b_size, signal_length))
    r2 = jnp.reshape(real, (b_size, signal_length))

    kernel = functools.partial(_ac_loss_kernel, n_coefs=n_coefs)
    out = pl.pallas_call(
        kernel,
        out_shape=jax.ShapeDtypeStruct((1, 1), jnp.float32),
        in_specs=[
            pl.BlockSpec(memory_space=pltpu.MemorySpace.VMEM),
            pl.BlockSpec(memory_space=pltpu.MemorySpace.VMEM),
        ],
        out_specs=pl.BlockSpec(memory_space=pltpu.MemorySpace.VMEM),
    )(f2, r2)
    return out[0, 0]


def _reference_loss(fake, real, n_coefs):
    """Pure NumPy reference mirroring the PyTorch code."""
    fake = np.asarray(fake, dtype=np.float32).reshape(fake.shape[0], -1)
    real = np.asarray(real, dtype=np.float32).reshape(real.shape[0], -1)

    def ac(x):
        T = x.shape[0] - n_coefs
        x0 = x[:T]
        d0 = x0 - x0.mean()
        coefs = []
        for lag in range(n_coefs + 1):
            xl = x[lag:lag + T]
            dl = xl - xl.mean()
            coefs.append((d0 * dl).mean())
        coefs = np.asarray(coefs, dtype=np.float32)
        return coefs / coefs[0]

    fa = np.stack([ac(row) for row in fake])
    ra = np.stack([ac(row) for row in real])
    return np.mean(np.abs(fa - ra))


if __name__ == "__main__":
    B, C, L = 2, 1, 16
    N_COEFS = 4  # L - N_COEFS = 12 >= N_COEFS, as required by the module

    key = jax.random.PRNGKey(0)
    k_fake, k_real = jax.random.split(key)
    fake = jax.random.normal(k_fake, (B, C, L), dtype=jnp.float32)
    real = jax.random.normal(k_real, (B, C, L), dtype=jnp.float32)

    loss = autocorrelation_loss(fake, real, N_COEFS)
    loss = jax.block_until_ready(loss)

    ref = _reference_loss(fake, real, N_COEFS)
    np.testing.assert_allclose(np.asarray(loss), ref, rtol=1e-5, atol=1e-5)

    print("KERNEL_OK")
</pallas_src>

<mosaic_0001>
module attributes {stable_mosaic.version = 11 : i64} {
  func.func @_ac_loss_kernel(%arg0: memref<2x16xf32, #tpu.memory_space<vmem>>, %arg1: memref<2x16xf32, #tpu.memory_space<vmem>>, %arg2: memref<1x1xf32, #tpu.memory_space<vmem>>) attributes {dimension_semantics = [], scalar_prefetch = 0 : i64, scratch_operands = 0 : i64, tpu.core_type = #tpu.core_type<tc>} {
    %c0 = arith.constant 0 : index
    %c0_0 = arith.constant 0 : index
    %0 = vector.load %arg0[%c0, %c0_0] : memref<2x16xf32, #tpu.memory_space<vmem>>, vector<2x16xf32>
    %c0_1 = arith.constant 0 : index
    %c0_2 = arith.constant 0 : index
    %1 = vector.load %arg1[%c0_1, %c0_2] : memref<2x16xf32, #tpu.memory_space<vmem>>, vector<2x16xf32>
    %2 = tpu.concatenate %0, %1 in 0 : vector<2x16xf32>, vector<2x16xf32> -> vector<4x16xf32>
    %3 = vector.extract_strided_slice %2 {offsets = [0, 0], sizes = [4, 12], strides = [1, 1]} : vector<4x16xf32> to vector<4x12xf32>
    %cst = arith.constant dense<0.000000e+00> : vector<4xf32>
    %4 = vector.multi_reduction <add>, %3, %cst [1] : vector<4x12xf32> to vector<4xf32>
    %5 = vector.shape_cast %4 : vector<4xf32> to vector<4x1xf32>
    %cst_3 = arith.constant 0.0833333358 : f32
    %6 = vector.broadcast %cst_3 : f32 to vector<4x1xf32>
    %7 = arith.mulf %5, %6 : vector<4x1xf32>
    %8 = vector.broadcast %7 : vector<4x1xf32> to vector<4x12xf32>
    %9 = arith.subf %3, %8 : vector<4x12xf32>
    %10 = arith.mulf %9, %3 : vector<4x12xf32>
    %cst_4 = arith.constant dense<0.000000e+00> : vector<4xf32>
    %11 = vector.multi_reduction <add>, %10, %cst_4 [1] : vector<4x12xf32> to vector<4xf32>
    %12 = vector.shape_cast %11 : vector<4xf32> to vector<4x1xf32>
    %cst_5 = arith.constant 1.000000e+00 : f32
    %13 = vector.broadcast %cst_5 : f32 to vector<4x1xf32>
    %14 = arith.divf %13, %12 : vector<4x1xf32>
    %15 = vector.broadcast %14 : vector<4x1xf32> to vector<4x12xf32>
    %16 = arith.mulf %9, %15 : vector<4x12xf32>
    %17 = vector.extract_strided_slice %16 {offsets = [0, 0], sizes = [2, 12], strides = [1, 1]} : vector<4x12xf32> to vector<2x12xf32>
    %18 = vector.extract_strided_slice %16 {offsets = [2, 0], sizes = [2, 12], strides = [1, 1]} : vector<4x12xf32> to vector<2x12xf32>
    %19 = vector.extract_strided_slice %2 {offsets = [0, 0], sizes = [2, 16], strides = [1, 1]} : vector<4x16xf32> to vector<2x16xf32>
    %20 = vector.extract_strided_slice %2 {offsets = [2, 0], sizes = [2, 16], strides = [1, 1]} : vector<4x16xf32> to vector<2x16xf32>
    %21 = vector.extract_strided_slice %19 {offsets = [0, 1], sizes = [2, 12], strides = [1, 1]} : vector<2x16xf32> to vector<2x12xf32>
    %22 = arith.mulf %17, %21 : vector<2x12xf32>
    %23 = vector.extract_strided_slice %20 {offsets = [0, 1], sizes = [2, 12], strides = [1, 1]} : vector<2x16xf32> to vector<2x12xf32>
    %24 = arith.mulf %18, %23 : vector<2x12xf32>
    %25 = arith.subf %22, %24 : vector<2x12xf32>
    %26 = vector.extract_strided_slice %19 {offsets = [0, 2], sizes = [2, 12], strides = [1, 1]} : vector<2x16xf32> to vector<2x12xf32>
    %27 = arith.mulf %17, %26 : vector<2x12xf32>
    %28 = vector.extract_strided_slice %20 {offsets = [0, 2], sizes = [2, 12], strides = [1, 1]} : vector<2x16xf32> to vector<2x12xf32>
    %29 = arith.mulf %18, %28 : vector<2x12xf32>
    %30 = arith.subf %27, %29 : vector<2x12xf32>
    %31 = vector.extract_strided_slice %19 {offsets = [0, 3], sizes = [2, 12], strides = [1, 1]} : vector<2x16xf32> to vector<2x12xf32>
    %32 = arith.mulf %17, %31 : vector<2x12xf32>
    %33 = vector.extract_strided_slice %20 {offsets = [0, 3], sizes = [2, 12], strides = [1, 1]} : vector<2x16xf32> to vector<2x12xf32>
    %34 = arith.mulf %18, %33 : vector<2x12xf32>
    %35 = arith.subf %32, %34 : vector<2x12xf32>
    %36 = vector.extract_strided_slice %19 {offsets = [0, 4], sizes = [2, 12], strides = [1, 1]} : vector<2x16xf32> to vector<2x12xf32>
    %37 = arith.mulf %17, %36 : vector<2x12xf32>
    %38 = vector.extract_strided_slice %20 {offsets = [0, 4], sizes = [2, 12], strides = [1, 1]} : vector<2x16xf32> to vector<2x12xf32>
    %39 = arith.mulf %18, %38 : vector<2x12xf32>
    %40 = arith.subf %37, %39 : vector<2x12xf32>
    %41 = tpu.concatenate %25, %30, %35, %40 in 0 : vector<2x12xf32>, vector<2x12xf32>, vector<2x12xf32>, vector<2x12xf32> -> vector<8x12xf32>
    %cst_6 = arith.constant dense<0.000000e+00> : vector<8xf32>
    %42 = vector.multi_reduction <add>, %41, %cst_6 [1] : vector<8x12xf32> to vector<8xf32>
    %43 = vector.shape_cast %42 : vector<8xf32> to vector<8x1xf32>
    %44 = math.absf %43 : vector<8x1xf32>
    %cst_7 = arith.constant dense<0.000000e+00> : vector<1xf32>
    %45 = vector.multi_reduction <add>, %44, %cst_7 [0] : vector<8x1xf32> to vector<1xf32>
    %46 = vector.shape_cast %45 : vector<1xf32> to vector<1x1xf32>
    %cst_8 = arith.constant 1.000000e+01 : f32
    %47 = vector.broadcast %cst_8 : f32 to vector<1x1xf32>
    %48 = arith.divf %46, %47 : vector<1x1xf32>
    %c0_9 = arith.constant 0 : index
    %c0_10 = arith.constant 0 : index
    %49 = vector.load %arg2[%c0_9, %c0_10] : memref<1x1xf32, #tpu.memory_space<vmem>>, vector<1x1xf32>
    tpu.vector_store %arg2[%c0_9, %c0_10], %48 {strides = array<i32>} : memref<1x1xf32, #tpu.memory_space<vmem>>, vector<1x1xf32>,
    return
  }
}

</mosaic_0001>

<llo_original>
// kernel: tpu_custom_call.1
$region0: #{tpu_custom_call.1}
  #allocation0 [shape = 'u32[]', space=smem, size = 0x4, offset = 0x4, fixed_abs, tag = 'smem constant byte address 0x4 - core index']
  #allocation1 [shape = 'u32[72,128]{1,0:T(1,128)}', space=vmem, size = 0x9000, scoped, tag = 'internal scratch']
  %s0 = inlined_call_operand.hbm [shape: f32[2,16], index: 0, kind: input, shape index: {}]
  %s1 = inlined_call_operand.hbm [shape: f32[2,16], index: 1, kind: input, shape index: {}]
  %s2 = inlined_call_operand.hbm [shape: f32[1,1], index: 2, kind: output, shape index: {}]
  %s3 = sld [smem:[#allocation0]]
  $region26: #{tpu_custom_call.1} parent=0
    _
  %s5 = ssub.s32 1, %s3
  %s6 = scalar_select 0, %s5, %s3
  $region1: #{tpu_custom_call.1} parent=0
    #allocation2 [shape = 'u8[1024]{0}', space=vmem, size = 0x400, scoped, tag = 'input window, operand 0, single buffered']
    #allocation3 [shape = 's32[1]{0}', space=sflag, size = 0x4, scoped, tag = 'scoped memory for tpu_custom_call.1']
    #allocation4 [shape = 's32[1]{0}', space=sflag, size = 0x4, scoped, tag = 'scoped memory for tpu_custom_call.1']
    #allocation5 [shape = 'u8[1024]{0}', space=vmem, size = 0x400, scoped, tag = 'input window, operand 1, single buffered']
    #allocation6 [shape = 's32[1]{0}', space=sflag, size = 0x4, scoped, tag = 'scoped memory for tpu_custom_call.1']
    #allocation7 [shape = 'u8[512]{0}', space=vmem, size = 0x400, scoped, tag = 'output window, operand 0, single buffered']
    %7 = vsyncpa [#allocation3], 0
    %8 = vsyncpa [#allocation6], 0
    %9 = vsyncpa [#allocation4], 0
    // Predicated region
    $region2: #{tpu_custom_call.1} parent=1 // pred_check
      _
    $region3: #{tpu_custom_call.1} parent=1 // pred_check_branch
      %11 = sbr.rel (0) target = $region5
    $region4: #{tpu_custom_call.1} parent=1 // pred_region
      %13 = vsyncadd [#allocation3], 0
      %s15 = sshll.u32 %s0, 4
      %s16 = int_to_ptr.hbm [resolvable:$true] %s15
      %s17 = sshll.u32 [#allocation2], 4
      %s18 = int_to_ptr.vmem [resolvable:$true] %s17
      %20 = dma.hbm_to_vmem [thread:$0]  %s16, 32, %s18, [#allocation3]
    $region5: #{tpu_custom_call.1} parent=1 // pred_fallthru
      _
    // Predicated region
    $region6: #{tpu_custom_call.1} parent=1 // pred_check
      _
    $region7: #{tpu_custom_call.1} parent=1 // pred_check_branch
      %22 = sbr.rel (0) target = $region9
    $region8: #{tpu_custom_call.1} parent=1 // pred_region
      %24 = vsyncadd [#allocation6], 0
      %s26 = sshll.u32 %s1, 4
      %s27 = int_to_ptr.hbm [resolvable:$true] %s26
      %s28 = sshll.u32 [#allocation5], 4
      %s29 = int_to_ptr.vmem [resolvable:$true] %s28
      %31 = dma.hbm_to_vmem [thread:$0]  %s27, 32, %s29, [#allocation6]
    $region9: #{tpu_custom_call.1} parent=1 // pred_fallthru
      _
    // Predicated region
    $region10: #{tpu_custom_call.1} parent=1 // pred_check
      _
    $region11: #{tpu_custom_call.1} parent=1 // pred_check_branch
      %33 = sbr.rel (0) target = $region13
    $region12: #{tpu_custom_call.1} parent=1 // pred_region
      %35 = dma.done [#allocation3], 32
    $region13: #{tpu_custom_call.1} parent=1 // pred_fallthru
      _
    // Predicated region
    $region14: #{tpu_custom_call.1} parent=1 // pred_check
      _
    $region15: #{tpu_custom_call.1} parent=1 // pred_check_branch
      %37 = sbr.rel (0) target = $region17
    $region16: #{tpu_custom_call.1} parent=1 // pred_region
      %39 = dma.done [#allocation6], 32
    $region17: #{tpu_custom_call.1} parent=1 // pred_fallthru
      _
    %v40 = vld [vmem:[#allocation2] sm:$0x3]
    %v41 = vld [vmem:[#allocation5] sm:$0x3]
    %v43 = vrot.slane %v41, 6
    %vm45 = vcmask 1041408
    %v46 = vsel %vm45, %v40, %v43
    %vm47 = vcmask 93184
    %v48 = vsel %vm47, %v46, 0.0
    %49 = vadd.xlane.f32.xlu0 %v48
    %v50 = vpop.xlane.xlu0 %49
    %v51 = vmul.f32 %v50, 0.083333336
    %v52 = vsub.f32 %v46, %v51
    %v53 = vmul.f32 %v52, %v46
    %v54 = vsel %vm47, %v53, 0.0
    %55 = vadd.xlane.f32.xlu0 %v54
    %v56 = vpop.xlane.xlu0 %55
    %v57 = vrcp.pop %v56
    %v58 = vmul.f32 %v56, %v57
    %v59 = vsub.f32 1.0, %v58
    %v60 = vmul.f32 %v57, %v59
    %v61 = vadd.f32 %v57, %v60
    %vm62 = vweird.f32 %v56
    %vm63 = vweird.f32 %v57
    %vm64 = vmor %vm62, %vm63
    %v65 = vsel %vm64, %v57, %v61
    %v66 = vand.u32 2147483647, %v56
    %vm67 = vcmp.eq.f32.partialorder %v66, 8.507059e+37
    %v68 = vand.u32 %v56, 2147483648
    %v69 = vor.u32 1.1754944e-38, %v68
    %v70 = vsel %vm67, %v69, %v65
    %v71 = vmul.f32 1.0, %v70
    %v72 = vmul.f32 %v52, %v71
    %74 = vrot.lane.b32.xlu0 %v46, 127
    %v75 = vpop.permute.xlu0 %74
    %v77 = vmul.f32 %v72, %v75
    %v79 = vrot.slane %v77, 2
    %v81 = vsub.f32 %v77, %v79
    %82 = vrot.lane.b32.xlu0 %v46, 126
    %v83 = vpop.permute.xlu0 %82
    %v85 = vmul.f32 %v72, %v83
    %v87 = vrot.slane %v85, 2
    %v89 = vsub.f32 %v85, %v87
    %90 = vrot.lane.b32.xlu0 %v46, 125
    %v91 = vpop.permute.xlu0 %90
    %v93 = vmul.f32 %v72, %v91
    %v95 = vrot.slane %v93, 2
    %v97 = vsub.f32 %v93, %v95
    %98 = vrot.lane.b32.xlu0 %v46, 124
    %v99 = vpop.permute.xlu0 %98
    %v101 = vmul.f32 %v72, %v99
    %v103 = vrot.slane %v101, 2
    %v105 = vsub.f32 %v101, %v103
    %v107 = vrot.slane %v89, 6
    %v110 = vrot.slane %v97, 4
    %v113 = vrot.slane %v105, 2
    %v115 = vsel %vm45, %v81, %v107
    %vm116 = vcmask 1043456
    %v117 = vsel %vm116, %v115, %v110
    %vm118 = vcmask 1045504
    %v119 = vsel %vm118, %v117, %v113
    %vm120 = vcmask 97280
    %v121 = vsel %vm120, %v119, 0.0
    %122 = vadd.xlane.f32.xlu0 %v121
    %v123 = vpop.xlane.xlu0 %122
    %v124 = vand.u32 2147483647, %v123
    %v125 = vrot.slane %v124, 4
    %v126 = vadd.f32 %v124, %v125
    %v127 = vrot.slane %v126, 2
    %v128 = vadd.f32 %v126, %v127
    %v129 = vrot.slane %v128, 1
    %v130 = vadd.f32 %v128, %v129
    %v131 = vrcp.pop 10.0
    %v132 = vmul.f32 10.0, %v131
    %v133 = vsub.f32 1.0, %v132
    %v134 = vmul.f32 %v131, %v133
    %v135 = vadd.f32 %v131, %v134
    %vm136 = vweird.f32 %v131
    %v137 = vsel %vm136, %v131, %v135
    %v138 = vmul.f32 %v130, %v137
    %vm139 = vcmask 0
    %140 = vst.msk [vmem:[#allocation7] sm:$0x1] %vm139, %v138
    // Predicated region
    $region18: #{tpu_custom_call.1} parent=1 // pred_check
      _
    $region19: #{tpu_custom_call.1} parent=1 // pred_check_branch
      %142 = sbr.rel (0) target = $region21
    $region20: #{tpu_custom_call.1} parent=1 // pred_region
      %144 = vsyncadd [#allocation4], 0
      %s146 = sshll.u32 [#allocation7], 4
      %s147 = int_to_ptr.vmem [resolvable:$true] %s146
      %s148 = sshll.u32 %s2, 4
      %s149 = int_to_ptr.hbm [resolvable:$true] %s148
      %151 = dma.vmem_to_hbm [thread:$0]  %s147, 16, %s149, [#allocation4]
    $region21: #{tpu_custom_call.1} parent=1 // pred_fallthru
      _
    // Predicated region
    $region22: #{tpu_custom_call.1} parent=1 // pred_check
      _
    $region23: #{tpu_custom_call.1} parent=1 // pred_check_branch
      %153 = sbr.rel (0) target = $region25
    $region24: #{tpu_custom_call.1} parent=1 // pred_region
      %155 = dma.done [#allocation4], 16
    $region25: #{tpu_custom_call.1} parent=1 // pred_fallthru
      _
    %156 = vsyncpa [#allocation3], 1
    %157 = vsyncpa [#allocation6], 1
    %158 = vsyncpa [#allocation4], 1

</llo_original>
